<compile_context>
chip_gen: v7x
topology: tpu7x:2x2x1
jax: 0.10.0
libtpu: 0.0.40
codegen_flags: <defaults>
</compile_context>

<pallas_src>
import functools

import jax
import jax.numpy as jnp
from jax.experimental import pallas as pl
from jax.experimental.pallas import tpu as pltpu


def _round_up(x, m):
    return ((x + m - 1) // m) * m


def _leaky_relu(x, negative_slope=0.2):
    return jnp.where(x > 0, x, negative_slope * x)


def generator_kernel(z_ref,
                     w1_ref, b1_ref,
                     w2_ref, b2_ref,
                     w3_ref, b3_ref,
                     w4_ref, b4_ref,
                     out_ref):
    # Layer 1: Linear(latent, 128) + LeakyReLU(0.2). z arrives pre-cast to bf16.
    h = jnp.dot(z_ref[...], w1_ref[...], preferred_element_type=jnp.float32)
    h = _leaky_relu(h + b1_ref[...])

    # Layer 2: Linear(128, 256) + LeakyReLU(0.2)
    h = jnp.dot(h.astype(jnp.bfloat16), w2_ref[...],
                preferred_element_type=jnp.float32)
    h = _leaky_relu(h + b2_ref[...])

    # Layer 3: Linear(256, 512) + LeakyReLU(0.2)
    h = jnp.dot(h.astype(jnp.bfloat16), w3_ref[...],
                preferred_element_type=jnp.float32)
    h = _leaky_relu(h + b3_ref[...])

    # Layer 4: Linear(512, out_pad) + Tanh
    h = jnp.dot(h.astype(jnp.bfloat16), w4_ref[...],
                preferred_element_type=jnp.float32)
    out_ref[...] = jnp.tanh(h + b4_ref[...]).astype(out_ref.dtype)


def prepare_params(params):
    """One-time param prep (hoisted out of the per-call forward).

    Casts weights to bf16 and zero-pads the last layer to a lane-dense
    (multiple-of-128) output width. Biases stay f32, shaped (1, N).
    """
    (w1, b1), (w2, b2), (w3, b3), (w4, b4) = params
    output_dim = w4.shape[1]
    out_pad = _round_up(output_dim, 128)
    prepared = {
        "w1": w1.astype(jnp.bfloat16),
        "b1": b1.reshape(1, -1).astype(jnp.float32),
        "w2": w2.astype(jnp.bfloat16),
        "b2": b2.reshape(1, -1).astype(jnp.float32),
        "w3": w3.astype(jnp.bfloat16),
        "b3": b3.reshape(1, -1).astype(jnp.float32),
        "w4": jnp.pad(w4, ((0, 0), (0, out_pad - output_dim))).astype(jnp.bfloat16),
        "b4": jnp.pad(b4.reshape(1, -1),
                      ((0, 0), (0, out_pad - output_dim))).astype(jnp.float32),
    }
    return prepared, output_dim


def _choose_batch_tiling(B, tile_b_max=1024):
    """Adaptive batch tile: multiple of 16 (clean bf16 sublane packing), no
    256-row blowup for tiny batches, and an even number of >=2 grid steps for
    larger batches so the parallel axis shards across both v7x TensorCores."""
    b16 = max(16, _round_up(B, 16))
    n_steps = max(1, -(-b16 // tile_b_max))
    if b16 >= 512:
        n_steps = _round_up(max(n_steps, 2), 2)
    tile_b = _round_up(-(-b16 // n_steps), 16)
    return tile_b, n_steps * tile_b


@functools.partial(jax.jit, static_argnames=("output_dim", "out_dtype", "tile_b_max"))
def generator_forward(z, prepared, *, output_dim, out_dtype=jnp.float32,
                      tile_b_max=1024):
    """z: (B, latent_dim) float32 -> (B, output_dim) out_dtype."""
    B, latent_dim = z.shape
    out_pad = prepared["w4"].shape[1]

    tile_b, b_pad = _choose_batch_tiling(B, tile_b_max)
    grid = (b_pad // tile_b,)

    # Streamed LHS: cast to bf16 here (halves DMA bytes) and pad batch only.
    # Latent stays un-padded: a full-extent last dim < 128 is legal.
    z_p = jnp.pad(z.astype(jnp.bfloat16), ((0, b_pad - B), (0, 0)))

    def batch_spec(n):
        # streamed (batch-tiled) operand, double-buffered by the pipeline
        return pl.BlockSpec((tile_b, n), lambda i: (i, 0))

    def resident_spec(shape):
        # whole-array block, constant block index -> VMEM-resident across grid
        return pl.BlockSpec(shape, lambda i: (0, 0))

    flops = 2 * b_pad * (latent_dim * 128 + 128 * 256 + 256 * 512 + 512 * out_pad)
    transcendentals = b_pad * out_pad  # tanh
    bytes_accessed = (
        z_p.size * 2
        + b_pad * out_pad * jnp.dtype(out_dtype).itemsize
        + sum(int(prepared[k].size) * 2 for k in ("w1", "w2", "w3", "w4"))
        + sum(int(prepared[k].size) * 4 for k in ("b1", "b2", "b3", "b4")))

    out_padded = pl.pallas_call(
        generator_kernel,
        out_shape=jax.ShapeDtypeStruct((b_pad, out_pad), out_dtype),
        grid=grid,
        in_specs=[
            batch_spec(latent_dim),
            resident_spec(prepared["w1"].shape), resident_spec(prepared["b1"].shape),
            resident_spec(prepared["w2"].shape), resident_spec(prepared["b2"].shape),
            resident_spec(prepared["w3"].shape), resident_spec(prepared["b3"].shape),
            resident_spec(prepared["w4"].shape), resident_spec(prepared["b4"].shape),
        ],
        out_specs=batch_spec(out_pad),
        compiler_params=pltpu.CompilerParams(
            dimension_semantics=("parallel",),
            vmem_limit_bytes=32 << 20,
        ),
        cost_estimate=pl.CostEstimate(
            flops=flops,
            transcendentals=transcendentals,
            bytes_accessed=bytes_accessed),
    )(z_p,
      prepared["w1"], prepared["b1"],
      prepared["w2"], prepared["b2"],
      prepared["w3"], prepared["b3"],
      prepared["w4"], prepared["b4"])

    # We're under jit, so this slice fuses with the kernel output writeback.
    return out_padded[:B, :output_dim]


def init_params(key, latent_dim, output_dim):
    """Deterministic init mimicking PyTorch nn.Linear defaults (U[-1/sqrt(fan_in), +])."""
    dims = [latent_dim, 128, 256, 512, output_dim]
    params = []
    for i in range(4):
        fan_in, fan_out = dims[i], dims[i + 1]
        key, kw, kb = jax.random.split(key, 3)
        bound = 1.0 / (fan_in ** 0.5)
        # stored as (in_features, out_features); biases kept 2D (1, out) for lane layout
        w = jax.random.uniform(kw, (fan_in, fan_out), jnp.float32, -bound, bound)
        b = jax.random.uniform(kb, (1, fan_out), jnp.float32, -bound, bound)
        params.append((w, b))
    return params


def reference_forward(z, params):
    """Pure-JAX reference mirroring the kernel's bf16-operand / f32-accumulate math."""
    h = z
    for i, (w, b) in enumerate(params):
        h = jnp.dot(h.astype(jnp.bfloat16), w.astype(jnp.bfloat16),
                    preferred_element_type=jnp.float32) + b
        if i < 3:
            h = jnp.where(h > 0, h, 0.2 * h)
        else:
            h = jnp.tanh(h)
    return h


def reference_forward_f32(z, params):
    h = z
    for i, (w, b) in enumerate(params):
        h = h @ w + b
        if i < 3:
            h = jnp.where(h > 0, h, 0.2 * h)
        else:
            h = jnp.tanh(h)
    return h


if __name__ == "__main__":
    latent_dim = 64      # not padded; K=64 matmul is legal
    output_dim = 200     # non-multiple of 128 -> exercises lane padding path
    batch = 8            # padded to a single 16-row tile (not 256)

    key = jax.random.PRNGKey(0)
    kz, kp = jax.random.split(key)
    z = jax.random.normal(kz, (batch, latent_dim), dtype=jnp.float32)
    params = init_params(kp, latent_dim, output_dim)

    # One-time parameter prep (bf16 cast + lane padding) outside the hot path.
    prepared, out_dim = prepare_params(params)

    out = generator_forward(z, prepared, output_dim=out_dim)
    out = jax.block_until_ready(out)

    assert out.shape == (batch, output_dim)

    # Exact-structure (bf16 operands, f32 accumulate) reference: tight tolerance.
    ref_bf16 = reference_forward(z, params)
    assert jnp.allclose(out, ref_bf16, atol=2e-3, rtol=2e-3), \
        "mismatch vs bf16-operand JAX reference"

    # Full-f32 reference: loose tolerance (intentional bf16 MXU precision trade).
    ref_f32 = reference_forward_f32(z, params)
    assert jnp.allclose(out, ref_f32, atol=5e-2, rtol=5e-2), \
        "mismatch vs f32 JAX reference"

    print("KERNEL_OK")
</pallas_src>

<mosaic_0001>
module attributes {stable_mosaic.version = 11 : i64} {
  func.func @generator_kernel(%arg0: i32, %arg1: memref<16x64xbf16, #tpu.memory_space<vmem>>, %arg2: memref<64x128xbf16, #tpu.memory_space<vmem>>, %arg3: memref<1x128xf32, #tpu.memory_space<vmem>>, %arg4: memref<128x256xbf16, #tpu.memory_space<vmem>>, %arg5: memref<1x256xf32, #tpu.memory_space<vmem>>, %arg6: memref<256x512xbf16, #tpu.memory_space<vmem>>, %arg7: memref<1x512xf32, #tpu.memory_space<vmem>>, %arg8: memref<512x256xbf16, #tpu.memory_space<vmem>>, %arg9: memref<1x256xf32, #tpu.memory_space<vmem>>, %arg10: memref<16x256xf32, #tpu.memory_space<vmem>>) attributes {dimension_semantics = [#tpu.dimension_semantics<parallel>], iteration_bounds = array<i64: 1>, scalar_prefetch = 0 : i64, scratch_operands = 0 : i64, tpu.core_type = #tpu.core_type<tc>, window_params = [{transform_indices = @transform_0, window_bounds = array<i64: 16, 64>}, {pipeline_mode = #tpu.pipeline_mode<synchronous>, transform_indices = @transform_1, window_bounds = array<i64: 64, 128>}, {pipeline_mode = #tpu.pipeline_mode<synchronous>, transform_indices = @transform_2, window_bounds = array<i64: 1, 128>}, {pipeline_mode = #tpu.pipeline_mode<synchronous>, transform_indices = @transform_3, window_bounds = array<i64: 128, 256>}, {pipeline_mode = #tpu.pipeline_mode<synchronous>, transform_indices = @transform_4, window_bounds = array<i64: 1, 256>}, {pipeline_mode = #tpu.pipeline_mode<synchronous>, transform_indices = @transform_5, window_bounds = array<i64: 256, 512>}, {pipeline_mode = #tpu.pipeline_mode<synchronous>, transform_indices = @transform_6, window_bounds = array<i64: 1, 512>}, {pipeline_mode = #tpu.pipeline_mode<synchronous>, transform_indices = @transform_7, window_bounds = array<i64: 512, 256>}, {pipeline_mode = #tpu.pipeline_mode<synchronous>, transform_indices = @transform_8, window_bounds = array<i64: 1, 256>}, {transform_indices = @transform_9, window_bounds = array<i64: 16, 256>}]} {
    %c0 = arith.constant 0 : index
    %c0_0 = arith.constant 0 : index
    %0 = vector.load %arg1[%c0, %c0_0] : memref<16x64xbf16, #tpu.memory_space<vmem>>, vector<16x64xbf16>
    %c0_1 = arith.constant 0 : index
    %c0_2 = arith.constant 0 : index
    %1 = vector.load %arg2[%c0_1, %c0_2] : memref<64x128xbf16, #tpu.memory_space<vmem>>, vector<64x128xbf16>
    %cst = arith.constant dense<0.000000e+00> : vector<16x128xf32>
    %2 = tpu.matmul %0, %1, %cst {dimension_numbers = #tpu.dot_dimension_numbers<[1], [0], [0], [1], [0, 0, 1, 1], [], []>} : vector<16x64xbf16>, vector<64x128xbf16>, vector<16x128xf32> -> vector<16x128xf32>
    %c0_3 = arith.constant 0 : index
    %c0_4 = arith.constant 0 : index
    %3 = vector.load %arg3[%c0_3, %c0_4] : memref<1x128xf32, #tpu.memory_space<vmem>>, vector<1x128xf32>
    %4 = vector.broadcast %3 : vector<1x128xf32> to vector<16x128xf32>
    %5 = arith.addf %2, %4 : vector<16x128xf32>
    %cst_5 = arith.constant 0.000000e+00 : f32
    %6 = vector.broadcast %cst_5 : f32 to vector<16x128xf32>
    %7 = arith.cmpf ogt, %5, %6 : vector<16x128xf32>
    %cst_6 = arith.constant 2.000000e-01 : f32
    %8 = vector.broadcast %cst_6 : f32 to vector<16x128xf32>
    %9 = arith.mulf %8, %5 : vector<16x128xf32>
    %10 = arith.select %7, %5, %9 : vector<16x128xi1>, vector<16x128xf32>
    %11 = arith.truncf %10 : vector<16x128xf32> to vector<16x128xbf16>
    %c0_7 = arith.constant 0 : index
    %c0_8 = arith.constant 0 : index
    %12 = vector.load %arg4[%c0_7, %c0_8] : memref<128x256xbf16, #tpu.memory_space<vmem>>, vector<128x256xbf16>
    %cst_9 = arith.constant dense<0.000000e+00> : vector<16x256xf32>
    %13 = tpu.matmul %11, %12, %cst_9 {dimension_numbers = #tpu.dot_dimension_numbers<[1], [0], [0], [1], [0, 0, 1, 1], [], []>} : vector<16x128xbf16>, vector<128x256xbf16>, vector<16x256xf32> -> vector<16x256xf32>
    %c0_10 = arith.constant 0 : index
    %c0_11 = arith.constant 0 : index
    %14 = vector.load %arg5[%c0_10, %c0_11] : memref<1x256xf32, #tpu.memory_space<vmem>>, vector<1x256xf32>
    %15 = vector.broadcast %14 : vector<1x256xf32> to vector<16x256xf32>
    %16 = arith.addf %13, %15 : vector<16x256xf32>
    %cst_12 = arith.constant 0.000000e+00 : f32
    %17 = vector.broadcast %cst_12 : f32 to vector<16x256xf32>
    %18 = arith.cmpf ogt, %16, %17 : vector<16x256xf32>
    %cst_13 = arith.constant 2.000000e-01 : f32
    %19 = vector.broadcast %cst_13 : f32 to vector<16x256xf32>
    %20 = arith.mulf %19, %16 : vector<16x256xf32>
    %21 = arith.select %18, %16, %20 : vector<16x256xi1>, vector<16x256xf32>
    %22 = arith.truncf %21 : vector<16x256xf32> to vector<16x256xbf16>
    %c0_14 = arith.constant 0 : index
    %c0_15 = arith.constant 0 : index
    %23 = vector.load %arg6[%c0_14, %c0_15] : memref<256x512xbf16, #tpu.memory_space<vmem>>, vector<256x512xbf16>
    %cst_16 = arith.constant dense<0.000000e+00> : vector<16x512xf32>
    %24 = tpu.matmul %22, %23, %cst_16 {dimension_numbers = #tpu.dot_dimension_numbers<[1], [0], [0], [1], [0, 0, 1, 1], [], []>} : vector<16x256xbf16>, vector<256x512xbf16>, vector<16x512xf32> -> vector<16x512xf32>
    %c0_17 = arith.constant 0 : index
    %c0_18 = arith.constant 0 : index
    %25 = vector.load %arg7[%c0_17, %c0_18] : memref<1x512xf32, #tpu.memory_space<vmem>>, vector<1x512xf32>
    %26 = vector.broadcast %25 : vector<1x512xf32> to vector<16x512xf32>
    %27 = arith.addf %24, %26 : vector<16x512xf32>
    %cst_19 = arith.constant 0.000000e+00 : f32
    %28 = vector.broadcast %cst_19 : f32 to vector<16x512xf32>
    %29 = arith.cmpf ogt, %27, %28 : vector<16x512xf32>
    %cst_20 = arith.constant 2.000000e-01 : f32
    %30 = vector.broadcast %cst_20 : f32 to vector<16x512xf32>
    %31 = arith.mulf %30, %27 : vector<16x512xf32>
    %32 = arith.select %29, %27, %31 : vector<16x512xi1>, vector<16x512xf32>
    %33 = arith.truncf %32 : vector<16x512xf32> to vector<16x512xbf16>
    %c0_21 = arith.constant 0 : index
    %c0_22 = arith.constant 0 : index
    %34 = vector.load %arg8[%c0_21, %c0_22] : memref<512x256xbf16, #tpu.memory_space<vmem>>, vector<512x256xbf16>
    %cst_23 = arith.constant dense<0.000000e+00> : vector<16x256xf32>
    %35 = tpu.matmul %33, %34, %cst_23 {dimension_numbers = #tpu.dot_dimension_numbers<[1], [0], [0], [1], [0, 0, 1, 1], [], []>} : vector<16x512xbf16>, vector<512x256xbf16>, vector<16x256xf32> -> vector<16x256xf32>
    %c0_24 = arith.constant 0 : index
    %c0_25 = arith.constant 0 : index
    %36 = vector.load %arg9[%c0_24, %c0_25] : memref<1x256xf32, #tpu.memory_space<vmem>>, vector<1x256xf32>
    %37 = vector.broadcast %36 : vector<1x256xf32> to vector<16x256xf32>
    %38 = arith.addf %35, %37 : vector<16x256xf32>
    %39 = math.tanh %38 : vector<16x256xf32>
    %c0_26 = arith.constant 0 : index
    %c0_27 = arith.constant 0 : index
    %40 = vector.load %arg10[%c0_26, %c0_27] : memref<16x256xf32, #tpu.memory_space<vmem>>, vector<16x256xf32>
    tpu.vector_store %arg10[%c0_26, %c0_27], %39 {strides = array<i32>} : memref<16x256xf32, #tpu.memory_space<vmem>>, vector<16x256xf32>,
    return
  }
  func.func @transform_0(%arg0: i32) -> (i32, i32) {
    %c0_i32 = arith.constant 0 : i32
    %c0_i32_0 = arith.constant 0 : i32
    return %arg0, %c0_i32 : i32, i32
  }
  func.func @transform_1(%arg0: i32) -> (i32, i32) {
    %c0_i32 = arith.constant 0 : i32
    %c0_i32_0 = arith.constant 0 : i32
    %c0_i32_1 = arith.constant 0 : i32
    return %c0_i32, %c0_i32_0 : i32, i32
  }
  func.func @transform_2(%arg0: i32) -> (i32, i32) {
    %c0_i32 = arith.constant 0 : i32
    %c0_i32_0 = arith.constant 0 : i32
    %c0_i32_1 = arith.constant 0 : i32
    return %c0_i32, %c0_i32_0 : i32, i32
  }
  func.func @transform_3(%arg0: i32) -> (i32, i32) {
    %c0_i32 = arith.constant 0 : i32
    %c0_i32_0 = arith.constant 0 : i32
    %c0_i32_1 = arith.constant 0 : i32
    return %c0_i32, %c0_i32_0 : i32, i32
  }
  func.func @transform_4(%arg0: i32) -> (i32, i32) {
    %c0_i32 = arith.constant 0 : i32
    %c0_i32_0 = arith.constant 0 : i32
    %c0_i32_1 = arith.constant 0 : i32
    return %c0_i32, %c0_i32_0 : i32, i32
  }
  func.func @transform_5(%arg0: i32) -> (i32, i32) {
    %c0_i32 = arith.constant 0 : i32
    %c0_i32_0 = arith.constant 0 : i32
    %c0_i32_1 = arith.constant 0 : i32
    return %c0_i32, %c0_i32_0 : i32, i32
  }
  func.func @transform_6(%arg0: i32) -> (i32, i32) {
    %c0_i32 = arith.constant 0 : i32
    %c0_i32_0 = arith.constant 0 : i32
    %c0_i32_1 = arith.constant 0 : i32
    return %c0_i32, %c0_i32_0 : i32, i32
  }
  func.func @transform_7(%arg0: i32) -> (i32, i32) {
    %c0_i32 = arith.constant 0 : i32
    %c0_i32_0 = arith.constant 0 : i32
    %c0_i32_1 = arith.constant 0 : i32
    return %c0_i32, %c0_i32_0 : i32, i32
  }
  func.func @transform_8(%arg0: i32) -> (i32, i32) {
    %c0_i32 = arith.constant 0 : i32
    %c0_i32_0 = arith.constant 0 : i32
    %c0_i32_1 = arith.constant 0 : i32
    return %c0_i32, %c0_i32_0 : i32, i32
  }
  func.func @transform_9(%arg0: i32) -> (i32, i32) {
    %c0_i32 = arith.constant 0 : i32
    %c0_i32_0 = arith.constant 0 : i32
    return %arg0, %c0_i32 : i32, i32
  }
}

</mosaic_0001>

<llo_original>
// kernel: generator_forward.1
$region0: #{generator_forward.1}
  #allocation0 [shape = 'u32[]', space=smem, size = 0x4, offset = 0x4, fixed_abs, tag = 'smem constant byte address 0x4 - core index']
  #allocation1 [shape = 'u32[144,128]{1,0:T(1,128)}', space=vmem, size = 0x12000, scoped, tag = 'internal scratch']
  %s0 = inlined_call_operand.vmem [shape: bf16[16,64], index: 0, kind: input, shape index: {}]
  %s1 = inlined_call_operand.vmem [shape: bf16[64,128], index: 1, kind: input, shape index: {}]
  %s2 = inlined_call_operand.vmem [shape: f32[1,128], index: 2, kind: input, shape index: {}]
  %s3 = inlined_call_operand.hbm [shape: bf16[128,256], index: 3, kind: input, shape index: {}]
  %s4 = inlined_call_operand.vmem [shape: f32[1,256], index: 4, kind: input, shape index: {}]
  %s5 = inlined_call_operand.hbm [shape: bf16[256,512], index: 5, kind: input, shape index: {}]
  %s6 = inlined_call_operand.vmem [shape: f32[1,512], index: 6, kind: input, shape index: {}]
  %s7 = inlined_call_operand.hbm [shape: bf16[512,256], index: 7, kind: input, shape index: {}]
  %s8 = inlined_call_operand.vmem [shape: f32[1,256], index: 8, kind: input, shape index: {}]
  %s9 = inlined_call_operand.vmem [shape: f32[16,256], index: 9, kind: output, shape index: {}]
  %s10 = sld [smem:[#allocation0]]
  $region58: #{generator_forward.1} parent=0
    _
  %s12 = ssub.s32 1, %s10
  %s13 = scalar_select 0, %s12, %s10
  $region1: #{generator_forward.1} parent=0
    #allocation2 [shape = 'u8[65536]{0}', space=vmem, size = 0x10000, scoped, tag = 'input window, operand 3, single buffered']
    #allocation3 [shape = 's32[1]{0}', space=sflag, size = 0x4, scoped, tag = 'scoped memory for generator_forward.1']
    #allocation4 [shape = 'u8[262144]{0}', space=vmem, size = 0x40000, scoped, tag = 'input window, operand 5, single buffered']
    #allocation5 [shape = 's32[1]{0}', space=sflag, size = 0x4, scoped, tag = 'scoped memory for generator_forward.1']
    #allocation6 [shape = 'u8[262144]{0}', space=vmem, size = 0x40000, scoped, tag = 'input window, operand 7, single buffered']
    %14 = vsyncpa [#allocation3], 0
    %15 = vsyncpa [#allocation5], 0
    // Predicated region
    $region2: #{generator_forward.1} parent=1 // pred_check
      _
    $region3: #{generator_forward.1} parent=1 // pred_check_branch
      %17 = sbr.rel (0) target = $region5
    $region4: #{generator_forward.1} parent=1 // pred_region
      _
    $region5: #{generator_forward.1} parent=1 // pred_fallthru
      _
    // Predicated region
    $region6: #{generator_forward.1} parent=1 // pred_check
      _
    $region7: #{generator_forward.1} parent=1 // pred_check_branch
      %19 = sbr.rel (0) target = $region9
    $region8: #{generator_forward.1} parent=1 // pred_region
      _
    $region9: #{generator_forward.1} parent=1 // pred_fallthru
      _
    // Predicated region
    $region10: #{generator_forward.1} parent=1 // pred_check
      _
    $region11: #{generator_forward.1} parent=1 // pred_check_branch
      %21 = sbr.rel (0) target = $region13
    $region12: #{generator_forward.1} parent=1 // pred_region
      _
    $region13: #{generator_forward.1} parent=1 // pred_fallthru
      _
    // Predicated region
    $region14: #{generator_forward.1} parent=1 // pred_check
      _
    $region15: #{generator_forward.1} parent=1 // pred_check_branch
      %23 = sbr.rel (0) target = $region17
    $region16: #{generator_forward.1} parent=1 // pred_region
      %s25 = ssub.s32 2048, 2048
      %26 = vsyncadd [#allocation3], %s25
      %s27 = sshll.u32 [#allocation2], 4
      %s28 = int_to_ptr.vmem [resolvable:$true] %s27
      %33 = dma.hbm_to_vmem [thread:$0]  %s3, 2048, %s28, [#allocation3], 128, 128, 8
    $region17: #{generator_forward.1} parent=1 // pred_fallthru
      _
    // Predicated region
    $region18: #{generator_forward.1} parent=1 // pred_check
      _
    $region19: #{generator_forward.1} parent=1 // pred_check_branch
      %35 = sbr.rel (0) target = $region21
    $region20: #{generator_forward.1} parent=1 // pred_region
      _
    $region21: #{generator_forward.1} parent=1 // pred_fallthru
      _
    // Predicated region
    $region22: #{generator_forward.1} parent=1 // pred_check
      _
    $region23: #{generator_forward.1} parent=1 // pred_check_branch
      %37 = sbr.rel (0) target = $region25
    $region24: #{generator_forward.1} parent=1 // pred_region
      %s39 = ssub.s32 8192, 8192
      %40 = vsyncadd [#allocation5], %s39
      %s41 = sshll.u32 [#allocation4], 4
      %s42 = int_to_ptr.vmem [resolvable:$true] %s41
      %47 = dma.hbm_to_vmem [thread:$0]  %s5, 8192, %s42, [#allocation5], 256, 256, 16
    $region25: #{generator_forward.1} parent=1 // pred_fallthru
      _
    // Predicated region
    $region26: #{generator_forward.1} parent=1 // pred_check
      _
    $region27: #{generator_forward.1} parent=1 // pred_check_branch
      %49 = sbr.rel (0) target = $region29
    $region28: #{generator_forward.1} parent=1 // pred_region
      _
    $region29: #{generator_forward.1} parent=1 // pred_fallthru
      _
    // Predicated region
    $region30: #{generator_forward.1} parent=1 // pred_check
      _
    $region31: #{generator_forward.1} parent=1 // pred_check_branch
      %51 = sbr.rel (0) target = $region33
    $region32: #{generator_forward.1} parent=1 // pred_region
      %s53 = ssub.s32 8192, 8192
      %54 = vsyncadd [#allocation5], %s53
      %s55 = sshll.u32 [#allocation6], 4
      %s56 = int_to_ptr.vmem [resolvable:$true] %s55
      %61 = dma.hbm_to_vmem [thread:$0]  %s7, 8192, %s56, [#allocation5], 128, 128, 8
    $region33: #{generator_forward.1} parent=1 // pred_fallthru
      _
    // Predicated region
    $region34: #{generator_forward.1} parent=1 // pred_check
      _
    $region35: #{generator_forward.1} parent=1 // pred_check_branch
      %63 = sbr.rel (0) target = $region37
    $region36: #{generator_forward.1} parent=1 // pred_region
      _
    $region37: #{generator_forward.1} parent=1 // pred_fallthru
      _
    // Predicated region
    $region38: #{generator_forward.1} parent=1 // pred_check
      _
    $region39: #{generator_forward.1} parent=1 // pred_check_branch
      %65 = sbr.rel (0) target = $region41
    $region40: #{generator_forward.1} parent=1 // pred_region
      %66 = dma.done [#allocation3], 2048
    $region41: #{generator_forward.1} parent=1 // pred_fallthru
      _
    // Predicated region
    $region42: #{generator_forward.1} parent=1 // pred_check
      _
    $region43: #{generator_forward.1} parent=1 // pred_check_branch
      %68 = sbr.rel (0) target = $region45
    $region44: #{generator_forward.1} parent=1 // pred_region
      %69 = dma.done [#allocation5], 8192
    $region45: #{generator_forward.1} parent=1 // pred_fallthru
      _
    // Predicated region
    $region46: #{generator_forward.1} parent=1 // pred_check
      _
    $region47: #{generator_forward.1} parent=1 // pred_check_branch
      %71 = sbr.rel (0) target = $region49
    $region48: #{generator_forward.1} parent=1 // pred_region
      %72 = dma.done [#allocation5], 8192
    $region49: #{generator_forward.1} parent=1 // pred_fallthru
      _
    %v74 = vld [vmem:[%s0] sm:$0xf]
    %v75 = vld [vmem:[%s0 + $0x4] sm:$0xf]
    %v76 = vld [vmem:[%s1] sm:$0xf]
    %v77 = vld [vmem:[%s1 + $0x4] sm:$0xf]
    %v78 = vld [vmem:[%s1 + $0x8] sm:$0xf]
    %v79 = vld [vmem:[%s1 + $0xc] sm:$0xf]
    %v80 = vld [vmem:[%s1 + $0x10] sm:$0xf]
    %v81 = vld [vmem:[%s1 + $0x14] sm:$0xf]
    %v82 = vld [vmem:[%s1 + $0x18] sm:$0xf]
    %v83 = vld [vmem:[%s1 + $0x1c] sm:$0xf]
    %v84 = vld [vmem:[%s2] sm:$0x1]
    %v86 = vlaneseq
    %v87 = vshrl.u32 %v86, 7
    %v88 = vsub.s32 0, %v87
    %v89 = vrot.slane %v84, %v88
    %v93 = vunpack.c.l.b16 %v74
    %v94 = vunpack.c.l.b16 %v75
    %v95 = vpack.c.b16 %v94, %v93
    %v104 = vunpack.c.l.b16 %v76
    %v105 = vunpack.c.l.b16 %v77
    %v106 = vunpack.c.l.b16 %v78
    %v107 = vunpack.c.l.b16 %v79
    %v108 = vunpack.c.l.b16 %v80
    %v109 = vunpack.c.l.b16 %v81
    %v110 = vunpack.c.l.b16 %v82
    %v111 = vunpack.c.l.b16 %v83
    %v112 = vpack.c.b16 %v105, %v104
    %v113 = vpack.c.b16 %v107, %v106
    %v114 = vpack.c.b16 %v109, %v108
    %v115 = vpack.c.b16 %v111, %v110
    %vm120 = vcmask 523264
    %v122 = vsel %vm120, %v95, 0
    %124 = vmatprep.subr.bf16.mxu0 0
    %125 = vmatpush1.bf16.msra.mxu0 %v112
    %126 = vmatprep.subr.bf16.mxu0 0
    %127 = vmatpush1.bf16.msra.mxu0 %v113
    %128 = vmatprep.subr.bf16.mxu0 0
    %129 = vmatpush1.bf16.msra.mxu0 %v114
    %130 = vmatprep.subr.bf16.mxu0 0
    %131 = vmatpush1.bf16.msra.mxu0 %v115
    %132 = vmatprep.subr.bf16.mxu0 0
    %133 = vmatpush1.bf16.msra.mxu0 0
    %134 = vmatprep.subr.bf16.mxu0 0
    %135 = vmatpush1.bf16.msra.mxu0 0
    %136 = vmatprep.subr.bf16.mxu0 0
    %137 = vmatpush1.bf16.msra.mxu0 0
    %138 = vmatprep.subr.bf16.mxu0 0
    %139 = vmatpush1.bf16.msra.mxu0 0
    %140 = vmatprep.subr.bf16.mxu0 0
    %141 = vmatpush1.bf16.msra.mxu0 0
    %142 = vmatprep.subr.bf16.mxu0 0
    %143 = vmatpush1.bf16.msra.mxu0 0
    %144 = vmatprep.subr.bf16.mxu0 0
    %145 = vmatpush1.bf16.msra.mxu0 0
    %146 = vmatprep.subr.bf16.mxu0 0
    %147 = vmatpush1.bf16.msra.mxu0 0
    %148 = vmatprep.subr.bf16.mxu0 0
    %149 = vmatpush1.bf16.msra.mxu0 0
    %150 = vmatprep.subr.bf16.mxu0 0
    %151 = vmatpush1.bf16.msra.mxu0 0
    %152 = vmatprep.subr.bf16.mxu0 0
    %153 = vmatpush1.bf16.msra.mxu0 0
    %154 = vmatprep.subr.bf16.mxu0 0
    %155 = vmatpush1.bf16.msra.mxu0 0
    %156 = vmatprep.mubr.bf16.mxu0 0
    %157 = vmatmul.mubr.bf16.gmra.mrb[0].mxu0 %v122
    %v158 = vpop.f32.mrb[0].mxu0
    %v159 = vadd.f32 %v89, %v158
    %v160 = vpop.f32.mrb[0].mxu0
    %v161 = vpop.f32.mrb[0].mxu0
    %v162 = vadd.f32 %v89, %v161
    %v163 = vpop.f32.mrb[0].mxu0
    %164 = vdwg.mxu0
    %vm165 = vcmp.gt.f32.partialorder %v159, 0.0
    %vm166 = vcmp.gt.f32.partialorder %v162, 0.0
    %v167 = vmul.f32 %v159, 0.2
    %v168 = vmul.f32 %v162, 0.2
    %v169 = vsel %vm165, %v159, %v167
    %v170 = vsel %vm166, %v162, %v168
    %v171 = vpack.c.bf16 %v170, %v169
    %v172 = vld [vmem:[#allocation2] sm:$0xff]
    %v173 = vld [vmem:[#allocation2 + $0x8] sm:$0xff]
    %v174 = vld [vmem:[#allocation2 + $0x10] sm:$0xff]
    %v175 = vld [vmem:[#allocation2 + $0x18] sm:$0xff]
    %v176 = vld [vmem:[#allocation2 + $0x20] sm:$0xff]
    %v177 = vld [vmem:[#allocation2 + $0x28] sm:$0xff]
    %v178 = vld [vmem:[#allocation2 + $0x30] sm:$0xff]
    %v179 = vld [vmem:[#allocation2 + $0x38] sm:$0xff]
    %v180 = vld [vmem:[#allocation2 + $0x40] sm:$0xff]
    %v181 = vld [vmem:[#allocation2 + $0x48] sm:$0xff]
    %v182 = vld [vmem:[#allocation2 + $0x50] sm:$0xff]
    %v183 = vld [vmem:[#allocation2 + $0x58] sm:$0xff]
    %v184 = vld [vmem:[#allocation2 + $0x60] sm:$0xff]
    %v185 = vld [vmem:[#allocation2 + $0x68] sm:$0xff]
    %v186 = vld [vmem:[#allocation2 + $0x70] sm:$0xff]
    %v187 = vld [vmem:[#allocation2 + $0x78] sm:$0xff]
    %v188 = vld [vmem:[%s4] sm:$0x3]
    %v190 = vlaneseq
    %v191 = vshrl.u32 %v190, 7
    %v192 = vsub.s32 0, %v191
    %v193 = vrot.slane %v188, %v192
    %v194 = vlaneseq
    %v195 = vshrl.u32 %v194, 7
    %v196 = vsub.s32 1, %v195
    %v197 = vrot.slane %v188, %v196
    %v216 = vunpack.c.l.b16 %v172
    %v217 = vunpack.c.h.b16 %v172
    %v218 = vunpack.c.l.b16 %v173
    %v219 = vunpack.c.h.b16 %v173
    %v220 = vunpack.c.l.b16 %v174
    %v221 = vunpack.c.h.b16 %v174
    %v222 = vunpack.c.l.b16 %v175
    %v223 = vunpack.c.h.b16 %v175
    %v224 = vunpack.c.l.b16 %v176
    %v225 = vunpack.c.h.b16 %v176
    %v226 = vunpack.c.l.b16 %v177
    %v227 = vunpack.c.h.b16 %v177
    %v228 = vunpack.c.l.b16 %v178
    %v229 = vunpack.c.h.b16 %v178
    %v230 = vunpack.c.l.b16 %v179
    %v231 = vunpack.c.h.b16 %v179
    %v232 = vunpack.c.l.b16 %v180
    %v233 = vunpack.c.h.b16 %v180
    %v234 = vunpack.c.l.b16 %v181
    %v235 = vunpack.c.h.b16 %v181
    %v236 = vunpack.c.l.b16 %v182
    %v237 = vunpack.c.h.b16 %v182
    %v238 = vunpack.c.l.b16 %v183
    %v239 = vunpack.c.h.b16 %v183
    %v240 = vunpack.c.l.b16 %v184
    %v241 = vunpack.c.h.b16 %v184
    %v242 = vunpack.c.l.b16 %v185
    %v243 = vunpack.c.h.b16 %v185
    %v244 = vunpack.c.l.b16 %v186
    %v245 = vunpack.c.h.b16 %v186
    %v246 = vunpack.c.l.b16 %v187
    %v247 = vunpack.c.h.b16 %v187
    %v248 = vpack.c.b16 %v218, %v216
    %v249 = vpack.c.b16 %v219, %v217
    %v250 = vpack.c.b16 %v222, %v220
    %v251 = vpack.c.b16 %v223, %v221
    %v252 = vpack.c.b16 %v226, %v224
    %v253 = vpack.c.b16 %v227, %v225
    %v254 = vpack.c.b16 %v230, %v228
    %v255 = vpack.c.b16 %v231, %v229
    %v256 = vpack.c.b16 %v234, %v232
    %v257 = vpack.c.b16 %v235, %v233
    %v258 = vpack.c.b16 %v238, %v236
    %v259 = vpack.c.b16 %v239, %v237
    %v260 = vpack.c.b16 %v242, %v240
    %v261 = vpack.c.b16 %v243, %v241
    %v262 = vpack.c.b16 %v246, %v244
    %v263 = vpack.c.b16 %v247, %v245
    %280 = vmatprep.subr.bf16.mxu0 %v249
    %281 = vmatpush1.bf16.msra.mxu0 %v248
    %282 = vmatprep.subr.bf16.mxu0 %v251
    %283 = vmatpush1.bf16.msra.mxu0 %v250
    %284 = vmatprep.subr.bf16.mxu0 %v253
    %285 = vmatpush1.bf16.msra.mxu0 %v252
    %286 = vmatprep.subr.bf16.mxu0 %v255
    %287 = vmatpush1.bf16.msra.mxu0 %v254
    %288 = vmatprep.subr.bf16.mxu0 %v257
    %289 = vmatpush1.bf16.msra.mxu0 %v256
    %290 = vmatprep.subr.bf16.mxu0 %v259
    %291 = vmatpush1.bf16.msra.mxu0 %v258
    %292 = vmatprep.subr.bf16.mxu0 %v261
    %293 = vmatpush1.bf16.msra.mxu0 %v260
    %294 = vmatprep.subr.bf16.mxu0 %v263
    %295 = vmatpush1.bf16.msra.mxu0 %v262
    %296 = vmatprep.subr.bf16.mxu0 0
    %297 = vmatpush1.bf16.msra.mxu0 0
    %298 = vmatprep.subr.bf16.mxu0 0
    %299 = vmatpush1.bf16.msra.mxu0 0
    %300 = vmatprep.subr.bf16.mxu0 0
    %301 = vmatpush1.bf16.msra.mxu0 0
    %302 = vmatprep.subr.bf16.mxu0 0
    %303 = vmatpush1.bf16.msra.mxu0 0
    %304 = vmatprep.subr.bf16.mxu0 0
    %305 = vmatpush1.bf16.msra.mxu0 0
    %306 = vmatprep.subr.bf16.mxu0 0
    %307 = vmatpush1.bf16.msra.mxu0 0
    %308 = vmatprep.subr.bf16.mxu0 0
    %309 = vmatpush1.bf16.msra.mxu0 0
    %310 = vmatprep.subr.bf16.mxu0 0
    %311 = vmatpush1.bf16.msra.mxu0 0
    %312 = vmatprep.mubr.bf16.mxu0 0
    %313 = vmatmul.mubr.bf16.gmra.mrb[0].mxu0 %v171
    %v314 = vpop.f32.mrb[0].mxu0
    %v315 = vadd.f32 %v193, %v314
    %v316 = vpop.f32.mrb[0].mxu0
    %v317 = vadd.f32 %v197, %v316
    %v318 = vpop.f32.mrb[0].mxu0
    %v319 = vadd.f32 %v193, %v318
    %v320 = vpop.f32.mrb[0].mxu0
    %v321 = vadd.f32 %v197, %v320
    %322 = vdwg.mxu0
    %vm323 = vcmp.gt.f32.partialorder %v315, 0.0
    %vm324 = vcmp.gt.f32.partialorder %v317, 0.0
    %vm325 = vcmp.gt.f32.partialorder %v319, 0.0
    %vm326 = vcmp.gt.f32.partialorder %v321, 0.0
    %v327 = vmul.f32 %v315, 0.2
    %v328 = vmul.f32 %v317, 0.2
    %v329 = vmul.f32 %v319, 0.2
    %v330 = vmul.f32 %v321, 0.2
    %v331 = vsel %vm323, %v315, %v327
    %v332 = vsel %vm324, %v317, %v328
    %v333 = vsel %vm325, %v319, %v329
    %v334 = vsel %vm326, %v321, %v330
    %v335 = vpack.c.bf16 %v333, %v331
    %v336 = vpack.c.bf16 %v334, %v332
    %v337 = vld [vmem:[#allocation4] sm:$0xff]
    %v338 = vld [vmem:[#allocation4 + $0x8] sm:$0xff]
    %v339 = vld [vmem:[#allocation4 + $0x10] sm:$0xff]
    %v340 = vld [vmem:[#allocation4 + $0x18] sm:$0xff]
    %v341 = vld [vmem:[#allocation4 + $0x20] sm:$0xff]
    %v342 = vld [vmem:[#allocation4 + $0x28] sm:$0xff]
    %v343 = vld [vmem:[#allocation4 + $0x30] sm:$0xff]
    %v344 = vld [vmem:[#allocation4 + $0x38] sm:$0xff]
    %v345 = vld [vmem:[#allocation4 + $0x40] sm:$0xff]
    %v346 = vld [vmem:[#allocation4 + $0x48] sm:$0xff]
    %v347 = vld [vmem:[#allocation4 + $0x50] sm:$0xff]
    %v348 = vld [vmem:[#allocation4 + $0x58] sm:$0xff]
    %v349 = vld [vmem:[#allocation4 + $0x60] sm:$0xff]
    %v350 = vld [vmem:[#allocation4 + $0x68] sm:$0xff]
    %v351 = vld [vmem:[#allocation4 + $0x70] sm:$0xff]
    %v352 = vld [vmem:[#allocation4 + $0x78] sm:$0xff]
    %v353 = vld [vmem:[#allocation4 + $0x80] sm:$0xff]
    %v354 = vld [vmem:[#allocation4 + $0x88] sm:$0xff]
    %v355 = vld [vmem:[#allocation4 + $0x90] sm:$0xff]
    %v356 = vld [vmem:[#allocation4 + $0x98] sm:$0xff]
    %v357 = vld [vmem:[#allocation4 + $0xa0] sm:$0xff]
    %v358 = vld [vmem:[#allocation4 + $0xa8] sm:$0xff]
    %v359 = vld [vmem:[#allocation4 + $0xb0] sm:$0xff]
    %v360 = vld [vmem:[#allocation4 + $0xb8] sm:$0xff]
    %v361 = vld [vmem:[#allocation4 + $0xc0] sm:$0xff]
    %v362 = vld [vmem:[#allocation4 + $0xc8] sm:$0xff]
    %v363 = vld [vmem:[#allocation4 + $0xd0] sm:$0xff]
    %v364 = vld [vmem:[#allocation4 + $0xd8] sm:$0xff]
    %v365 = vld [vmem:[#allocation4 + $0xe0] sm:$0xff]
    %v366 = vld [vmem:[#allocation4 + $0xe8] sm:$0xff]
    %v367 = vld [vmem:[#allocation4 + $0xf0] sm:$0xff]
    %v368 = vld [vmem:[#allocation4 + $0xf8] sm:$0xff]
    %v369 = vld [vmem:[#allocation4 + $0x100] sm:$0xff]
    %v370 = vld [vmem:[#allocation4 + $0x108] sm:$0xff]
    %v371 = vld [vmem:[#allocation4 + $0x110] sm:$0xff]
    %v372 = vld [vmem:[#allocation4 + $0x118] sm:$0xff]
    %v373 = vld [vmem:[#allocation4 + $0x120] sm:$0xff]
    %v374 = vld [vmem:[#allocation4 + $0x128] sm:$0xff]
    %v375 = vld [vmem:[#allocation4 + $0x130] sm:$0xff]
    %v376 = vld [vmem:[#allocation4 + $0x138] sm:$0xff]
    %v377 = vld [vmem:[#allocation4 + $0x140] sm:$0xff]
    %v378 = vld [vmem:[#allocation4 + $0x148] sm:$0xff]
    %v379 = vld [vmem:[#allocation4 + $0x150] sm:$0xff]
    %v380 = vld [vmem:[#allocation4 + $0x158] sm:$0xff]
    %v381 = vld [vmem:[#allocation4 + $0x160] sm:$0xff]
    %v382 = vld [vmem:[#allocation4 + $0x168] sm:$0xff]
    %v383 = vld [vmem:[#allocation4 + $0x170] sm:$0xff]
    %v384 = vld [vmem:[#allocation4 + $0x178] sm:$0xff]
    %v385 = vld [vmem:[#allocation4 + $0x180] sm:$0xff]
    %v386 = vld [vmem:[#allocation4 + $0x188] sm:$0xff]
    %v387 = vld [vmem:[#allocation4 + $0x190] sm:$0xff]
    %v388 = vld [vmem:[#allocation4 + $0x198] sm:$0xff]
    %v389 = vld [vmem:[#allocation4 + $0x1a0] sm:$0xff]
    %v390 = vld [vmem:[#allocation4 + $0x1a8] sm:$0xff]
    %v391 = vld [vmem:[#allocation4 + $0x1b0] sm:$0xff]
    %v392 = vld [vmem:[#allocation4 + $0x1b8] sm:$0xff]
    %v393 = vld [vmem:[#allocation4 + $0x1c0] sm:$0xff]
    %v394 = vld [vmem:[#allocation4 + $0x1c8] sm:$0xff]
    %v395 = vld [vmem:[#allocation4 + $0x1d0] sm:$0xff]
    %v396 = vld [vmem:[#allocation4 + $0x1d8] sm:$0xff]
    %v397 = vld [vmem:[#allocation4 + $0x1e0] sm:$0xff]
    %v398 = vld [vmem:[#allocation4 + $0x1e8] sm:$0xff]
    %v399 = vld [vmem:[#allocation4 + $0x1f0] sm:$0xff]
    %v400 = vld [vmem:[#allocation4 + $0x1f8] sm:$0xff]
    %v401 = vld [vmem:[%s6] sm:$0xf]
    %v403 = vlaneseq
    %v404 = vshrl.u32 %v403, 7
    %v405 = vsub.s32 0, %v404
    %v406 = vrot.slane %v401, %v405
    %v407 = vlaneseq
    %v408 = vshrl.u32 %v407, 7
    %v409 = vsub.s32 1, %v408
    %v410 = vrot.slane %v401, %v409
    %v411 = vlaneseq
    %v412 = vshrl.u32 %v411, 7
    %v413 = vsub.s32 2, %v412
    %v414 = vrot.slane %v401, %v413
    %v415 = vlaneseq
    %v416 = vshrl.u32 %v415, 7
    %v417 = vsub.s32 3, %v416
    %v418 = vrot.slane %v401, %v417
    %v487 = vunpack.c.l.b16 %v337
    %v488 = vunpack.c.h.b16 %v337
    %v489 = vunpack.c.l.b16 %v338
    %v490 = vunpack.c.h.b16 %v338
    %v491 = vunpack.c.l.b16 %v339
    %v492 = vunpack.c.h.b16 %v339
    %v493 = vunpack.c.l.b16 %v340
    %v494 = vunpack.c.h.b16 %v340
    %v495 = vunpack.c.l.b16 %v341
    %v496 = vunpack.c.h.b16 %v341
    %v497 = vunpack.c.l.b16 %v342
    %v498 = vunpack.c.h.b16 %v342
    %v499 = vunpack.c.l.b16 %v343
    %v500 = vunpack.c.h.b16 %v343
    %v501 = vunpack.c.l.b16 %v344
    %v502 = vunpack.c.h.b16 %v344
    %v503 = vunpack.c.l.b16 %v345
    %v504 = vunpack.c.h.b16 %v345
    %v505 = vunpack.c.l.b16 %v346
    %v506 = vunpack.c.h.b16 %v346
    %v507 = vunpack.c.l.b16 %v347
    %v508 = vunpack.c.h.b16 %v347
    %v509 = vunpack.c.l.b16 %v348
    %v510 = vunpack.c.h.b16 %v348
    %v511 = vunpack.c.l.b16 %v349
    %v512 = vunpack.c.h.b16 %v349
    %v513 = vunpack.c.l.b16 %v350
    %v514 = vunpack.c.h.b16 %v350
    %v515 = vunpack.c.l.b16 %v351
    %v516 = vunpack.c.h.b16 %v351
    %v517 = vunpack.c.l.b16 %v352
    %v518 = vunpack.c.h.b16 %v352
    %v519 = vunpack.c.l.b16 %v353
    %v520 = vunpack.c.h.b16 %v353
    %v521 = vunpack.c.l.b16 %v354
    %v522 = vunpack.c.h.b16 %v354
    %v523 = vunpack.c.l.b16 %v355
    %v524 = vunpack.c.h.b16 %v355
    %v525 = vunpack.c.l.b16 %v356
    %v526 = vunpack.c.h.b16 %v356
    %v527 = vunpack.c.l.b16 %v357
    %v528 = vunpack.c.h.b16 %v357
    %v529 = vunpack.c.l.b16 %v358
    %v530 = vunpack.c.h.b16 %v358
    %v531 = vunpack.c.l.b16 %v359
    %v532 = vunpack.c.h.b16 %v359
    %v533 = vunpack.c.l.b16 %v360
    %v534 = vunpack.c.h.b16 %v360
    %v535 = vunpack.c.l.b16 %v361
    %v536 = vunpack.c.h.b16 %v361
    %v537 = vunpack.c.l.b16 %v362
    %v538 = vunpack.c.h.b16 %v362
    %v539 = vunpack.c.l.b16 %v363
    %v540 = vunpack.c.h.b16 %v363
    %v541 = vunpack.c.l.b16 %v364
    %v542 = vunpack.c.h.b16 %v364
    %v543 = vunpack.c.l.b16 %v365
    %v544 = vunpack.c.h.b16 %v365
    %v545 = vunpack.c.l.b16 %v366
    %v546 = vunpack.c.h.b16 %v366
    %v547 = vunpack.c.l.b16 %v367
    %v548 = vunpack.c.h.b16 %v367
    %v549 = vunpack.c.l.b16 %v368
    %v550 = vunpack.c.h.b16 %v368
    %v551 = vunpack.c.l.b16 %v369
    %v552 = vunpack.c.h.b16 %v369
    %v553 = vunpack.c.l.b16 %v370
    %v554 = vunpack.c.h.b16 %v370
    %v555 = vunpack.c.l.b16 %v371
    %v556 = vunpack.c.h.b16 %v371
    %v557 = vunpack.c.l.b16 %v372
    %v558 = vunpack.c.h.b16 %v372
    %v559 = vunpack.c.l.b16 %v373
    %v560 = vunpack.c.h.b16 %v373
    %v561 = vunpack.c.l.b16 %v374
    %v562 = vunpack.c.h.b16 %v374
    %v563 = vunpack.c.l.b16 %v375
    %v564 = vunpack.c.h.b16 %v375
    %v565 = vunpack.c.l.b16 %v376
    %v566 = vunpack.c.h.b16 %v376
    %v567 = vunpack.c.l.b16 %v377
    %v568 = vunpack.c.h.b16 %v377
    %v569 = vunpack.c.l.b16 %v378
    %v570 = vunpack.c.h.b16 %v378
    %v571 = vunpack.c.l.b16 %v379
    %v572 = vunpack.c.h.b16 %v379
    %v573 = vunpack.c.l.b16 %v380
    %v574 = vunpack.c.h.b16 %v380
    %v575 = vunpack.c.l.b16 %v381
    %v576 = vunpack.c.h.b16 %v381
    %v577 = vunpack.c.l.b16 %v382
    %v578 = vunpack.c.h.b16 %v382
    %v579 = vunpack.c.l.b16 %v383
    %v580 = vunpack.c.h.b16 %v383
    %v581 = vunpack.c.l.b16 %v384
    %v582 = vunpack.c.h.b16 %v384
    %v583 = vunpack.c.l.b16 %v385
    %v584 = vunpack.c.h.b16 %v385
    %v585 = vunpack.c.l.b16 %v386
    %v586 = vunpack.c.h.b16 %v386
    %v587 = vunpack.c.l.b16 %v387
    %v588 = vunpack.c.h.b16 %v387
    %v589 = vunpack.c.l.b16 %v388
    %v590 = vunpack.c.h.b16 %v388
    %v591 = vunpack.c.l.b16 %v389
    %v592 = vunpack.c.h.b16 %v389
    %v593 = vunpack.c.l.b16 %v390
    %v594 = vunpack.c.h.b16 %v390
    %v595 = vunpack.c.l.b16 %v391
    %v596 = vunpack.c.h.b16 %v391
    %v597 = vunpack.c.l.b16 %v392
    %v598 = vunpack.c.h.b16 %v392
    %v599 = vunpack.c.l.b16 %v393
    %v600 = vunpack.c.h.b16 %v393
    %v601 = vunpack.c.l.b16 %v394
    %v602 = vunpack.c.h.b16 %v394
    %v603 = vunpack.c.l.b16 %v395
    %v604 = vunpack.c.h.b16 %v395
    %v605 = vunpack.c.l.b16 %v396
    %v606 = vunpack.c.h.b16 %v396
    %v607 = vunpack.c.l.b16 %v397
    %v608 = vunpack.c.h.b16 %v397
    %v609 = vunpack.c.l.b16 %v398
    %v610 = vunpack.c.h.b16 %v398
    %v611 = vunpack.c.l.b16 %v399
    %v612 = vunpack.c.h.b16 %v399
    %v613 = vunpack.c.l.b16 %v400
    %v614 = vunpack.c.h.b16 %v400
    %v615 = vpack.c.b16 %v491, %v487
    %v616 = vpack.c.b16 %v492, %v488
    %v617 = vpack.c.b16 %v493, %v489
    %v618 = vpack.c.b16 %v494, %v490
    %v619 = vpack.c.b16 %v499, %v495
    %v620 = vpack.c.b16 %v500, %v496
    %v621 = vpack.c.b16 %v501, %v497
    %v622 = vpack.c.b16 %v502, %v498
    %v623 = vpack.c.b16 %v507, %v503
    %v624 = vpack.c.b16 %v508, %v504
    %v625 = vpack.c.b16 %v509, %v505
    %v626 = vpack.c.b16 %v510, %v506
    %v627 = vpack.c.b16 %v515, %v511
    %v628 = vpack.c.b16 %v516, %v512
    %v629 = vpack.c.b16 %v517, %v513
    %v630 = vpack.c.b16 %v518, %v514
    %v631 = vpack.c.b16 %v523, %v519
    %v632 = vpack.c.b16 %v524, %v520
    %v633 = vpack.c.b16 %v525, %v521
    %v634 = vpack.c.b16 %v526, %v522
    %v635 = vpack.c.b16 %v531, %v527
    %v636 = vpack.c.b16 %v532, %v528
    %v637 = vpack.c.b16 %v533, %v529
    %v638 = vpack.c.b16 %v534, %v530
    %v639 = vpack.c.b16 %v539, %v535
    %v640 = vpack.c.b16 %v540, %v536
    %v641 = vpack.c.b16 %v541, %v537
    %v642 = vpack.c.b16 %v542, %v538
    %v643 = vpack.c.b16 %v547, %v543
    %v644 = vpack.c.b16 %v548, %v544
    %v645 = vpack.c.b16 %v549, %v545
    %v646 = vpack.c.b16 %v550, %v546
    %v647 = vpack.c.b16 %v555, %v551
    %v648 = vpack.c.b16 %v556, %v552
    %v649 = vpack.c.b16 %v557, %v553
    %v650 = vpack.c.b16 %v558, %v554
    %v651 = vpack.c.b16 %v563, %v559
    %v652 = vpack.c.b16 %v564, %v560
    %v653 = vpack.c.b16 %v565, %v561
    %v654 = vpack.c.b16 %v566, %v562
    %v655 = vpack.c.b16 %v571, %v567
    %v656 = vpack.c.b16 %v572, %v568
    %v657 = vpack.c.b16 %v573, %v569
    %v658 = vpack.c.b16 %v574, %v570
    %v659 = vpack.c.b16 %v579, %v575
    %v660 = vpack.c.b16 %v580, %v576
    %v661 = vpack.c.b16 %v581, %v577
    %v662 = vpack.c.b16 %v582, %v578
    %v663 = vpack.c.b16 %v587, %v583
    %v664 = vpack.c.b16 %v588, %v584
    %v665 = vpack.c.b16 %v589, %v585
    %v666 = vpack.c.b16 %v590, %v586
    %v667 = vpack.c.b16 %v595, %v591
    %v668 = vpack.c.b16 %v596, %v592
    %v669 = vpack.c.b16 %v597, %v593
    %v670 = vpack.c.b16 %v598, %v594
    %v671 = vpack.c.b16 %v603, %v599
    %v672 = vpack.c.b16 %v604, %v600
    %v673 = vpack.c.b16 %v605, %v601
    %v674 = vpack.c.b16 %v606, %v602
    %v675 = vpack.c.b16 %v611, %v607
    %v676 = vpack.c.b16 %v612, %v608
    %v677 = vpack.c.b16 %v613, %v609
    %v678 = vpack.c.b16 %v614, %v610
    %743 = vmatprep.subr.bf16.mxu0 %v616
    %744 = vmatpush1.bf16.msra.mxu0 %v615
    %745 = vmatprep.subr.bf16.mxu0 %v620
    %746 = vmatpush1.bf16.msra.mxu0 %v619
    %747 = vmatprep.subr.bf16.mxu0 %v624
    %748 = vmatpush1.bf16.msra.mxu0 %v623
    %749 = vmatprep.subr.bf16.mxu0 %v628
    %750 = vmatpush1.bf16.msra.mxu0 %v627
    %751 = vmatprep.subr.bf16.mxu0 %v632
    %752 = vmatpush1.bf16.msra.mxu0 %v631
    %753 = vmatprep.subr.bf16.mxu0 %v636
    %754 = vmatpush1.bf16.msra.mxu0 %v635
    %755 = vmatprep.subr.bf16.mxu0 %v640
    %756 = vmatpush1.bf16.msra.mxu0 %v639
    %757 = vmatprep.subr.bf16.mxu0 %v644
    %758 = vmatpush1.bf16.msra.mxu0 %v643
    %759 = vmatprep.subr.bf16.mxu0 %v648
    %760 = vmatpush1.bf16.msra.mxu0 %v647
    %761 = vmatprep.subr.bf16.mxu0 %v652
    %762 = vmatpush1.bf16.msra.mxu0 %v651
    %763 = vmatprep.subr.bf16.mxu0 %v656
    %764 = vmatpush1.bf16.msra.mxu0 %v655
    %765 = vmatprep.subr.bf16.mxu0 %v660
    %766 = vmatpush1.bf16.msra.mxu0 %v659
    %767 = vmatprep.subr.bf16.mxu0 %v664
    %768 = vmatpush1.bf16.msra.mxu0 %v663
    %769 = vmatprep.subr.bf16.mxu0 %v668
    %770 = vmatpush1.bf16.msra.mxu0 %v667
    %771 = vmatprep.subr.bf16.mxu0 %v672
    %772 = vmatpush1.bf16.msra.mxu0 %v671
    %773 = vmatprep.subr.bf16.mxu0 %v676
    %774 = vmatpush1.bf16.msra.mxu0 %v675
    %775 = vmatprep.mubr.bf16.mxu0 %v336
    %776 = vmatmul.mubr.bf16.gmra.mrb[0].mxu0 %v335
    %v777 = vpop.f32.mrb[0].mxu0
    %v778 = vadd.f32 %v406, %v777
    %v779 = vpop.f32.mrb[0].mxu0
    %v780 = vadd.f32 %v410, %v779
    %v781 = vpop.f32.mrb[0].mxu0
    %v782 = vadd.f32 %v406, %v781
    %v783 = vpop.f32.mrb[0].mxu0
    %v784 = vadd.f32 %v410, %v783
    %785 = vdwg.mxu0
    %786 = vmatprep.subr.bf16.mxu0 %v618
    %787 = vmatpush1.bf16.msra.mxu0 %v617
    %788 = vmatprep.subr.bf16.mxu0 %v622
    %789 = vmatpush1.bf16.msra.mxu0 %v621
    %790 = vmatprep.subr.bf16.mxu0 %v626
    %791 = vmatpush1.bf16.msra.mxu0 %v625
    %792 = vmatprep.subr.bf16.mxu0 %v630
    %793 = vmatpush1.bf16.msra.mxu0 %v629
    %794 = vmatprep.subr.bf16.mxu0 %v634
    %795 = vmatpush1.bf16.msra.mxu0 %v633
    %796 = vmatprep.subr.bf16.mxu0 %v638
    %797 = vmatpush1.bf16.msra.mxu0 %v637
    %798 = vmatprep.subr.bf16.mxu0 %v642
    %799 = vmatpush1.bf16.msra.mxu0 %v641
    %800 = vmatprep.subr.bf16.mxu0 %v646
    %801 = vmatpush1.bf16.msra.mxu0 %v645
    %802 = vmatprep.subr.bf16.mxu0 %v650
    %803 = vmatpush1.bf16.msra.mxu0 %v649
    %804 = vmatprep.subr.bf16.mxu0 %v654
    %805 = vmatpush1.bf16.msra.mxu0 %v653
    %806 = vmatprep.subr.bf16.mxu0 %v658
    %807 = vmatpush1.bf16.msra.mxu0 %v657
    %808 = vmatprep.subr.bf16.mxu0 %v662
    %809 = vmatpush1.bf16.msra.mxu0 %v661
    %810 = vmatprep.subr.bf16.mxu0 %v666
    %811 = vmatpush1.bf16.msra.mxu0 %v665
    %812 = vmatprep.subr.bf16.mxu0 %v670
    %813 = vmatpush1.bf16.msra.mxu0 %v669
    %814 = vmatprep.subr.bf16.mxu0 %v674
    %815 = vmatpush1.bf16.msra.mxu0 %v673
    %816 = vmatprep.subr.bf16.mxu0 %v678
    %817 = vmatpush1.bf16.msra.mxu0 %v677
    %818 = vmatprep.mubr.bf16.mxu0 %v336
    %819 = vmatmul.mubr.bf16.gmra.mrb[0].mxu0 %v335
    %v820 = vpop.f32.mrb[0].mxu0
    %v821 = vadd.f32 %v414, %v820
    %v822 = vpop.f32.mrb[0].mxu0
    %v823 = vadd.f32 %v418, %v822
    %v824 = vpop.f32.mrb[0].mxu0
    %v825 = vadd.f32 %v414, %v824
    %v826 = vpop.f32.mrb[0].mxu0
    %v827 = vadd.f32 %v418, %v826
    %828 = vdwg.mxu0
    %vm829 = vcmp.gt.f32.partialorder %v778, 0.0
    %vm830 = vcmp.gt.f32.partialorder %v780, 0.0
    %vm831 = vcmp.gt.f32.partialorder %v821, 0.0
    %vm832 = vcmp.gt.f32.partialorder %v823, 0.0
    %vm833 = vcmp.gt.f32.partialorder %v782, 0.0
    %vm834 = vcmp.gt.f32.partialorder %v784, 0.0
    %vm835 = vcmp.gt.f32.partialorder %v825, 0.0
    %vm836 = vcmp.gt.f32.partialorder %v827, 0.0
    %v837 = vmul.f32 %v778, 0.2
    %v838 = vmul.f32 %v780, 0.2
    %v839 = vmul.f32 %v821, 0.2
    %v840 = vmul.f32 %v823, 0.2
    %v841 = vmul.f32 %v782, 0.2
    %v842 = vmul.f32 %v784, 0.2
    %v843 = vmul.f32 %v825, 0.2
    %v844 = vmul.f32 %v827, 0.2
    %v845 = vsel %vm829, %v778, %v837
    %v846 = vsel %vm830, %v780, %v838
    %v847 = vsel %vm831, %v821, %v839
    %v848 = vsel %vm832, %v823, %v840
    %v849 = vsel %vm833, %v782, %v841
    %v850 = vsel %vm834, %v784, %v842
    %v851 = vsel %vm835, %v825, %v843
    %v852 = vsel %vm836, %v827, %v844
    %v853 = vpack.c.bf16 %v849, %v845
    %v854 = vpack.c.bf16 %v850, %v846
    %v855 = vpack.c.bf16 %v851, %v847
    %v856 = vpack.c.bf16 %v852, %v848
    %v857 = vld [vmem:[#allocation6] sm:$0xff]
    %v858 = vld [vmem:[#allocation6 + $0x8] sm:$0xff]
    %v859 = vld [vmem:[#allocation6 + $0x10] sm:$0xff]
    %v860 = vld [vmem:[#allocation6 + $0x18] sm:$0xff]
    %v861 = vld [vmem:[#allocation6 + $0x20] sm:$0xff]
    %v862 = vld [vmem:[#allocation6 + $0x28] sm:$0xff]
    %v863 = vld [vmem:[#allocation6 + $0x30] sm:$0xff]
    %v864 = vld [vmem:[#allocation6 + $0x38] sm:$0xff]
    %v865 = vld [vmem:[#allocation6 + $0x40] sm:$0xff]
    %v866 = vld [vmem:[#allocation6 + $0x48] sm:$0xff]
    %v867 = vld [vmem:[#allocation6 + $0x50] sm:$0xff]
    %v868 = vld [vmem:[#allocation6 + $0x58] sm:$0xff]
    %v869 = vld [vmem:[#allocation6 + $0x60] sm:$0xff]
    %v870 = vld [vmem:[#allocation6 + $0x68] sm:$0xff]
    %v871 = vld [vmem:[#allocation6 + $0x70] sm:$0xff]
    %v872 = vld [vmem:[#allocation6 + $0x78] sm:$0xff]
    %v873 = vld [vmem:[#allocation6 + $0x80] sm:$0xff]
    %v874 = vld [vmem:[#allocation6 + $0x88] sm:$0xff]
    %v875 = vld [vmem:[#allocation6 + $0x90] sm:$0xff]
    %v876 = vld [vmem:[#allocation6 + $0x98] sm:$0xff]
    %v877 = vld [vmem:[#allocation6 + $0xa0] sm:$0xff]
    %v878 = vld [vmem:[#allocation6 + $0xa8] sm:$0xff]
    %v879 = vld [vmem:[#allocation6 + $0xb0] sm:$0xff]
    %v880 = vld [vmem:[#allocation6 + $0xb8] sm:$0xff]
    %v881 = vld [vmem:[#allocation6 + $0xc0] sm:$0xff]
    %v882 = vld [vmem:[#allocation6 + $0xc8] sm:$0xff]
    %v883 = vld [vmem:[#allocation6 + $0xd0] sm:$0xff]
    %v884 = vld [vmem:[#allocation6 + $0xd8] sm:$0xff]
    %v885 = vld [vmem:[#allocation6 + $0xe0] sm:$0xff]
    %v886 = vld [vmem:[#allocation6 + $0xe8] sm:$0xff]
    %v887 = vld [vmem:[#allocation6 + $0xf0] sm:$0xff]
    %v888 = vld [vmem:[#allocation6 + $0xf8] sm:$0xff]
    %v889 = vld [vmem:[#allocation6 + $0x100] sm:$0xff]
    %v890 = vld [vmem:[#allocation6 + $0x108] sm:$0xff]
    %v891 = vld [vmem:[#allocation6 + $0x110] sm:$0xff]
    %v892 = vld [vmem:[#allocation6 + $0x118] sm:$0xff]
    %v893 = vld [vmem:[#allocation6 + $0x120] sm:$0xff]
    %v894 = vld [vmem:[#allocation6 + $0x128] sm:$0xff]
    %v895 = vld [vmem:[#allocation6 + $0x130] sm:$0xff]
    %v896 = vld [vmem:[#allocation6 + $0x138] sm:$0xff]
    %v897 = vld [vmem:[#allocation6 + $0x140] sm:$0xff]
    %v898 = vld [vmem:[#allocation6 + $0x148] sm:$0xff]
    %v899 = vld [vmem:[#allocation6 + $0x150] sm:$0xff]
    %v900 = vld [vmem:[#allocation6 + $0x158] sm:$0xff]
    %v901 = vld [vmem:[#allocation6 + $0x160] sm:$0xff]
    %v902 = vld [vmem:[#allocation6 + $0x168] sm:$0xff]
    %v903 = vld [vmem:[#allocation6 + $0x170] sm:$0xff]
    %v904 = vld [vmem:[#allocation6 + $0x178] sm:$0xff]
    %v905 = vld [vmem:[#allocation6 + $0x180] sm:$0xff]
    %v906 = vld [vmem:[#allocation6 + $0x188] sm:$0xff]
    %v907 = vld [vmem:[#allocation6 + $0x190] sm:$0xff]
    %v908 = vld [vmem:[#allocation6 + $0x198] sm:$0xff]
    %v909 = vld [vmem:[#allocation6 + $0x1a0] sm:$0xff]
    %v910 = vld [vmem:[#allocation6 + $0x1a8] sm:$0xff]
    %v911 = vld [vmem:[#allocation6 + $0x1b0] sm:$0xff]
    %v912 = vld [vmem:[#allocation6 + $0x1b8] sm:$0xff]
    %v913 = vld [vmem:[#allocation6 + $0x1c0] sm:$0xff]
    %v914 = vld [vmem:[#allocation6 + $0x1c8] sm:$0xff]
    %v915 = vld [vmem:[#allocation6 + $0x1d0] sm:$0xff]
    %v916 = vld [vmem:[#allocation6 + $0x1d8] sm:$0xff]
    %v917 = vld [vmem:[#allocation6 + $0x1e0] sm:$0xff]
    %v918 = vld [vmem:[#allocation6 + $0x1e8] sm:$0xff]
    %v919 = vld [vmem:[#allocation6 + $0x1f0] sm:$0xff]
    %v920 = vld [vmem:[#allocation6 + $0x1f8] sm:$0xff]
    %v921 = vld [vmem:[%s8] sm:$0x3]
    %v923 = vlaneseq
    %v924 = vshrl.u32 %v923, 7
    %v925 = vsub.s32 0, %v924
    %v926 = vrot.slane %v921, %v925
    %v927 = vlaneseq
    %v928 = vshrl.u32 %v927, 7
    %v929 = vsub.s32 1, %v928
    %v930 = vrot.slane %v921, %v929
    %v997 = vunpack.c.l.b16 %v857
    %v998 = vunpack.c.h.b16 %v857
    %v999 = vunpack.c.l.b16 %v858
    %v1000 = vunpack.c.h.b16 %v858
    %v1001 = vunpack.c.l.b16 %v859
    %v1002 = vunpack.c.h.b16 %v859
    %v1003 = vunpack.c.l.b16 %v860
    %v1004 = vunpack.c.h.b16 %v860
    %v1005 = vunpack.c.l.b16 %v861
    %v1006 = vunpack.c.h.b16 %v861
    %v1007 = vunpack.c.l.b16 %v862
    %v1008 = vunpack.c.h.b16 %v862
    %v1009 = vunpack.c.l.b16 %v863
    %v1010 = vunpack.c.h.b16 %v863
    %v1011 = vunpack.c.l.b16 %v864
    %v1012 = vunpack.c.h.b16 %v864
    %v1013 = vunpack.c.l.b16 %v865
    %v1014 = vunpack.c.h.b16 %v865
    %v1015 = vunpack.c.l.b16 %v866
    %v1016 = vunpack.c.h.b16 %v866
    %v1017 = vunpack.c.l.b16 %v867
    %v1018 = vunpack.c.h.b16 %v867
    %v1019 = vunpack.c.l.b16 %v868
    %v1020 = vunpack.c.h.b16 %v868
    %v1021 = vunpack.c.l.b16 %v869
    %v1022 = vunpack.c.h.b16 %v869
    %v1023 = vunpack.c.l.b16 %v870
    %v1024 = vunpack.c.h.b16 %v870
    %v1025 = vunpack.c.l.b16 %v871
    %v1026 = vunpack.c.h.b16 %v871
    %v1027 = vunpack.c.l.b16 %v872
    %v1028 = vunpack.c.h.b16 %v872
    %v1029 = vunpack.c.l.b16 %v873
    %v1030 = vunpack.c.h.b16 %v873
    %v1031 = vunpack.c.l.b16 %v874
    %v1032 = vunpack.c.h.b16 %v874
    %v1033 = vunpack.c.l.b16 %v875
    %v1034 = vunpack.c.h.b16 %v875
    %v1035 = vunpack.c.l.b16 %v876
    %v1036 = vunpack.c.h.b16 %v876
    %v1037 = vunpack.c.l.b16 %v877
    %v1038 = vunpack.c.h.b16 %v877
    %v1039 = vunpack.c.l.b16 %v878
    %v1040 = vunpack.c.h.b16 %v878
    %v1041 = vunpack.c.l.b16 %v879
    %v1042 = vunpack.c.h.b16 %v879
    %v1043 = vunpack.c.l.b16 %v880
    %v1044 = vunpack.c.h.b16 %v880
    %v1045 = vunpack.c.l.b16 %v881
    %v1046 = vunpack.c.h.b16 %v881
    %v1047 = vunpack.c.l.b16 %v882
    %v1048 = vunpack.c.h.b16 %v882
    %v1049 = vunpack.c.l.b16 %v883
    %v1050 = vunpack.c.h.b16 %v883
    %v1051 = vunpack.c.l.b16 %v884
    %v1052 = vunpack.c.h.b16 %v884
    %v1053 = vunpack.c.l.b16 %v885
    %v1054 = vunpack.c.h.b16 %v885
    %v1055 = vunpack.c.l.b16 %v886
    %v1056 = vunpack.c.h.b16 %v886
    %v1057 = vunpack.c.l.b16 %v887
    %v1058 = vunpack.c.h.b16 %v887
    %v1059 = vunpack.c.l.b16 %v888
    %v1060 = vunpack.c.h.b16 %v888
    %v1061 = vunpack.c.l.b16 %v889
    %v1062 = vunpack.c.h.b16 %v889
    %v1063 = vunpack.c.l.b16 %v890
    %v1064 = vunpack.c.h.b16 %v890
    %v1065 = vunpack.c.l.b16 %v891
    %v1066 = vunpack.c.h.b16 %v891
    %v1067 = vunpack.c.l.b16 %v892
    %v1068 = vunpack.c.h.b16 %v892
    %v1069 = vunpack.c.l.b16 %v893
    %v1070 = vunpack.c.h.b16 %v893
    %v1071 = vunpack.c.l.b16 %v894
    %v1072 = vunpack.c.h.b16 %v894
    %v1073 = vunpack.c.l.b16 %v895
    %v1074 = vunpack.c.h.b16 %v895
    %v1075 = vunpack.c.l.b16 %v896
    %v1076 = vunpack.c.h.b16 %v896
    %v1077 = vunpack.c.l.b16 %v897
    %v1078 = vunpack.c.h.b16 %v897
    %v1079 = vunpack.c.l.b16 %v898
    %v1080 = vunpack.c.h.b16 %v898
    %v1081 = vunpack.c.l.b16 %v899
    %v1082 = vunpack.c.h.b16 %v899
    %v1083 = vunpack.c.l.b16 %v900
    %v1084 = vunpack.c.h.b16 %v900
    %v1085 = vunpack.c.l.b16 %v901
    %v1086 = vunpack.c.h.b16 %v901
    %v1087 = vunpack.c.l.b16 %v902
    %v1088 = vunpack.c.h.b16 %v902
    %v1089 = vunpack.c.l.b16 %v903
    %v1090 = vunpack.c.h.b16 %v903
    %v1091 = vunpack.c.l.b16 %v904
    %v1092 = vunpack.c.h.b16 %v904
    %v1093 = vunpack.c.l.b16 %v905
    %v1094 = vunpack.c.h.b16 %v905
    %v1095 = vunpack.c.l.b16 %v906
    %v1096 = vunpack.c.h.b16 %v906
    %v1097 = vunpack.c.l.b16 %v907
    %v1098 = vunpack.c.h.b16 %v907
    %v1099 = vunpack.c.l.b16 %v908
    %v1100 = vunpack.c.h.b16 %v908
    %v1101 = vunpack.c.l.b16 %v909
    %v1102 = vunpack.c.h.b16 %v909
    %v1103 = vunpack.c.l.b16 %v910
    %v1104 = vunpack.c.h.b16 %v910
    %v1105 = vunpack.c.l.b16 %v911
    %v1106 = vunpack.c.h.b16 %v911
    %v1107 = vunpack.c.l.b16 %v912
    %v1108 = vunpack.c.h.b16 %v912
    %v1109 = vunpack.c.l.b16 %v913
    %v1110 = vunpack.c.h.b16 %v913
    %v1111 = vunpack.c.l.b16 %v914
    %v1112 = vunpack.c.h.b16 %v914
    %v1113 = vunpack.c.l.b16 %v915
    %v1114 = vunpack.c.h.b16 %v915
    %v1115 = vunpack.c.l.b16 %v916
    %v1116 = vunpack.c.h.b16 %v916
    %v1117 = vunpack.c.l.b16 %v917
    %v1118 = vunpack.c.h.b16 %v917
    %v1119 = vunpack.c.l.b16 %v918
    %v1120 = vunpack.c.h.b16 %v918
    %v1121 = vunpack.c.l.b16 %v919
    %v1122 = vunpack.c.h.b16 %v919
    %v1123 = vunpack.c.l.b16 %v920
    %v1124 = vunpack.c.h.b16 %v920
    %v1125 = vpack.c.b16 %v999, %v997
    %v1126 = vpack.c.b16 %v1000, %v998
    %v1127 = vpack.c.b16 %v1003, %v1001
    %v1128 = vpack.c.b16 %v1004, %v1002
    %v1129 = vpack.c.b16 %v1007, %v1005
    %v1130 = vpack.c.b16 %v1008, %v1006
    %v1131 = vpack.c.b16 %v1011, %v1009
    %v1132 = vpack.c.b16 %v1012, %v1010
    %v1133 = vpack.c.b16 %v1015, %v1013
    %v1134 = vpack.c.b16 %v1016, %v1014
    %v1135 = vpack.c.b16 %v1019, %v1017
    %v1136 = vpack.c.b16 %v1020, %v1018
    %v1137 = vpack.c.b16 %v1023, %v1021
    %v1138 = vpack.c.b16 %v1024, %v1022
    %v1139 = vpack.c.b16 %v1027, %v1025
    %v1140 = vpack.c.b16 %v1028, %v1026
    %v1141 = vpack.c.b16 %v1031, %v1029
    %v1142 = vpack.c.b16 %v1032, %v1030
    %v1143 = vpack.c.b16 %v1035, %v1033
    %v1144 = vpack.c.b16 %v1036, %v1034
    %v1145 = vpack.c.b16 %v1039, %v1037
    %v1146 = vpack.c.b16 %v1040, %v1038
    %v1147 = vpack.c.b16 %v1043, %v1041
    %v1148 = vpack.c.b16 %v1044, %v1042
    %v1149 = vpack.c.b16 %v1047, %v1045
    %v1150 = vpack.c.b16 %v1048, %v1046
    %v1151 = vpack.c.b16 %v1051, %v1049
    %v1152 = vpack.c.b16 %v1052, %v1050
    %v1153 = vpack.c.b16 %v1055, %v1053
    %v1154 = vpack.c.b16 %v1056, %v1054
    %v1155 = vpack.c.b16 %v1059, %v1057
    %v1156 = vpack.c.b16 %v1060, %v1058
    %v1157 = vpack.c.b16 %v1063, %v1061
    %v1158 = vpack.c.b16 %v1064, %v1062
    %v1159 = vpack.c.b16 %v1067, %v1065
    %v1160 = vpack.c.b16 %v1068, %v1066
    %v1161 = vpack.c.b16 %v1071, %v1069
    %v1162 = vpack.c.b16 %v1072, %v1070
    %v1163 = vpack.c.b16 %v1075, %v1073
    %v1164 = vpack.c.b16 %v1076, %v1074
    %v1165 = vpack.c.b16 %v1079, %v1077
    %v1166 = vpack.c.b16 %v1080, %v1078
    %v1167 = vpack.c.b16 %v1083, %v1081
    %v1168 = vpack.c.b16 %v1084, %v1082
    %v1169 = vpack.c.b16 %v1087, %v1085
    %v1170 = vpack.c.b16 %v1088, %v1086
    %v1171 = vpack.c.b16 %v1091, %v1089
    %v1172 = vpack.c.b16 %v1092, %v1090
    %v1173 = vpack.c.b16 %v1095, %v1093
    %v1174 = vpack.c.b16 %v1096, %v1094
    %v1175 = vpack.c.b16 %v1099, %v1097
    %v1176 = vpack.c.b16 %v1100, %v1098
    %v1177 = vpack.c.b16 %v1103, %v1101
    %v1178 = vpack.c.b16 %v1104, %v1102
    %v1179 = vpack.c.b16 %v1107, %v1105
    %v1180 = vpack.c.b16 %v1108, %v1106
    %v1181 = vpack.c.b16 %v1111, %v1109
    %v1182 = vpack.c.b16 %v1112, %v1110
    %v1183 = vpack.c.b16 %v1115, %v1113
    %v1184 = vpack.c.b16 %v1116, %v1114
    %v1185 = vpack.c.b16 %v1119, %v1117
    %v1186 = vpack.c.b16 %v1120, %v1118
    %v1187 = vpack.c.b16 %v1123, %v1121
    %v1188 = vpack.c.b16 %v1124, %v1122
    %1253 = vmatprep.subr.bf16.mxu0 %v1126
    %1254 = vmatpush1.bf16.msra.mxu0 %v1125
    %1255 = vmatprep.subr.bf16.mxu0 %v1128
    %1256 = vmatpush1.bf16.msra.mxu0 %v1127
    %1257 = vmatprep.subr.bf16.mxu0 %v1130
    %1258 = vmatpush1.bf16.msra.mxu0 %v1129
    %1259 = vmatprep.subr.bf16.mxu0 %v1132
    %1260 = vmatpush1.bf16.msra.mxu0 %v1131
    %1261 = vmatprep.subr.bf16.mxu0 %v1134
    %1262 = vmatpush1.bf16.msra.mxu0 %v1133
    %1263 = vmatprep.subr.bf16.mxu0 %v1136
    %1264 = vmatpush1.bf16.msra.mxu0 %v1135
    %1265 = vmatprep.subr.bf16.mxu0 %v1138
    %1266 = vmatpush1.bf16.msra.mxu0 %v1137
    %1267 = vmatprep.subr.bf16.mxu0 %v1140
    %1268 = vmatpush1.bf16.msra.mxu0 %v1139
    %1269 = vmatprep.subr.bf16.mxu0 %v1142
    %1270 = vmatpush1.bf16.msra.mxu0 %v1141
    %1271 = vmatprep.subr.bf16.mxu0 %v1144
    %1272 = vmatpush1.bf16.msra.mxu0 %v1143
    %1273 = vmatprep.subr.bf16.mxu0 %v1146
    %1274 = vmatpush1.bf16.msra.mxu0 %v1145
    %1275 = vmatprep.subr.bf16.mxu0 %v1148
    %1276 = vmatpush1.bf16.msra.mxu0 %v1147
    %1277 = vmatprep.subr.bf16.mxu0 %v1150
    %1278 = vmatpush1.bf16.msra.mxu0 %v1149
    %1279 = vmatprep.subr.bf16.mxu0 %v1152
    %1280 = vmatpush1.bf16.msra.mxu0 %v1151
    %1281 = vmatprep.subr.bf16.mxu0 %v1154
    %1282 = vmatpush1.bf16.msra.mxu0 %v1153
    %1283 = vmatprep.subr.bf16.mxu0 %v1156
    %1284 = vmatpush1.bf16.msra.mxu0 %v1155
    %1285 = vmatprep.mubr.bf16.mxu0 %v854
    %1286 = vmatmul.mubr.bf16.gmra.mrb[0].mxu0 %v853
    %v1287 = vpop.f32.mrb[0].mxu0
    %v1288 = vadd.f32 %v926, %v1287
    %v1289 = vpop.f32.mrb[0].mxu0
    %v1290 = vadd.f32 %v930, %v1289
    %v1291 = vpop.f32.mrb[0].mxu0
    %v1292 = vadd.f32 %v926, %v1291
    %v1293 = vpop.f32.mrb[0].mxu0
    %v1294 = vadd.f32 %v930, %v1293
    %1295 = vdwg.mxu0
    %1296 = vmatprep.subr.bf16.mxu0 %v1158
    %1297 = vmatpush1.bf16.msra.mxu0 %v1157
    %1298 = vmatprep.subr.bf16.mxu0 %v1160
    %1299 = vmatpush1.bf16.msra.mxu0 %v1159
    %1300 = vmatprep.subr.bf16.mxu0 %v1162
    %1301 = vmatpush1.bf16.msra.mxu0 %v1161
    %1302 = vmatprep.subr.bf16.mxu0 %v1164
    %1303 = vmatpush1.bf16.msra.mxu0 %v1163
    %1304 = vmatprep.subr.bf16.mxu0 %v1166
    %1305 = vmatpush1.bf16.msra.mxu0 %v1165
    %1306 = vmatprep.subr.bf16.mxu0 %v1168
    %1307 = vmatpush1.bf16.msra.mxu0 %v1167
    %1308 = vmatprep.subr.bf16.mxu0 %v1170
    %1309 = vmatpush1.bf16.msra.mxu0 %v1169
    %1310 = vmatprep.subr.bf16.mxu0 %v1172
    %1311 = vmatpush1.bf16.msra.mxu0 %v1171
    %1312 = vmatprep.subr.bf16.mxu0 %v1174
    %1313 = vmatpush1.bf16.msra.mxu0 %v1173
    %1314 = vmatprep.subr.bf16.mxu0 %v1176
    %1315 = vmatpush1.bf16.msra.mxu0 %v1175
    %1316 = vmatprep.subr.bf16.mxu0 %v1178
    %1317 = vmatpush1.bf16.msra.mxu0 %v1177
    %1318 = vmatprep.subr.bf16.mxu0 %v1180
    %1319 = vmatpush1.bf16.msra.mxu0 %v1179
    %1320 = vmatprep.subr.bf16.mxu0 %v1182
    %1321 = vmatpush1.bf16.msra.mxu0 %v1181
    %1322 = vmatprep.subr.bf16.mxu0 %v1184
    %1323 = vmatpush1.bf16.msra.mxu0 %v1183
    %1324 = vmatprep.subr.bf16.mxu0 %v1186
    %1325 = vmatpush1.bf16.msra.mxu0 %v1185
    %1326 = vmatprep.subr.bf16.mxu0 %v1188
    %1327 = vmatpush1.bf16.msra.mxu0 %v1187
    %1328 = vmatprep.mubr.bf16.mxu0 %v856
    %1329 = vmatmul.mubr.bf16.gmra.mrb[0].mxu0 %v855
    %v1330 = vpop.f32.mrb[0].mxu0
    %v1331 = vadd.f32 %v1288, %v1330
    %v1332 = vpop.f32.mrb[0].mxu0
    %v1333 = vadd.f32 %v1290, %v1332
    %v1334 = vpop.f32.mrb[0].mxu0
    %v1335 = vadd.f32 %v1292, %v1334
    %v1336 = vpop.f32.mrb[0].mxu0
    %v1337 = vadd.f32 %v1294, %v1336
    %1338 = vdwg.mxu0
    %v1339 = vtanh.pop %v1331
    %v1340 = vtanh.pop %v1333
    %v1341 = vtanh.pop %v1335
    %v1342 = vtanh.pop %v1337
    %1343 = vst [vmem:[%s9] sm:$0xff] %v1339
    %1344 = vst [vmem:[%s9 + $0x8] sm:$0xff] %v1340
    %1345 = vst [vmem:[%s9 + $0x10] sm:$0xff] %v1341
    %1346 = vst [vmem:[%s9 + $0x18] sm:$0xff] %v1342
    // Predicated region
    $region50: #{generator_forward.1} parent=1 // pred_check
      _
    $region51: #{generator_forward.1} parent=1 // pred_check_branch
      %1348 = sbr.rel (0) target = $region53
    $region52: #{generator_forward.1} parent=1 // pred_region
      _
    $region53: #{generator_forward.1} parent=1 // pred_fallthru
      _
    // Predicated region
    $region54: #{generator_forward.1} parent=1 // pred_check
      _
    $region55: #{generator_forward.1} parent=1 // pred_check_branch
      %1350 = sbr.rel (0) target = $region57
    $region56: #{generator_forward.1} parent=1 // pred_region
      _
    $region57: #{generator_forward.1} parent=1 // pred_fallthru
      _
    %1351 = vsyncpa [#allocation3], 1
    %1352 = vsyncpa [#allocation5], 1

</llo_original>
